<compile_context>
chip_gen: v6e
topology: v6e:2x2x1
jax: 0.10.0
libtpu: 0.0.40
codegen_flags: <defaults>
</compile_context>

<pallas_src>
import functools

import jax
import jax.numpy as jnp
import numpy as np
from jax.experimental import pallas as pl
from jax.experimental.pallas import tpu as pltpu

CAPACITY = 64
LATENT_DIMS = 10
SP = 32 * 32          # flattened 32x32 spatial plane (lane dimension)

# ConvTranspose2d(k=4, s=2, p=1): output row (2*i + parity) receives contributions from
# exactly two kernel rows.  parity -> ((kernel_row, input_row_offset), ...)
ROWTAPS = {0: ((1, 0), (3, -1)),
           1: ((0, 1), (2, 0))}


def _parity_taps(ph, pw):
    """[(kernel (kh,kw), input offset (dr,dc)), ...] for output parity (ph, pw)."""
    return [((kh, kw), (dr, dc))
            for (kh, dr) in ROWTAPS[ph]
            for (kw, dc) in ROWTAPS[pw]]


# ------------------------------- FC kernel ----------------------------------
def _fc_kernel(x_ref, w_ref, o_ref):
    o_ref[...] = jnp.dot(x_ref[...], w_ref[...], preferred_element_type=jnp.float32)


def fc_pallas(x_aug, w_aug, tile_n=32768):
    """x_aug: (B, K+1) with a trailing ones column; w_aug: (K+1, N) with bias as last row."""
    B, K = x_aug.shape
    N = w_aug.shape[1]
    assert N % tile_n == 0
    return pl.pallas_call(
        _fc_kernel,
        out_shape=jax.ShapeDtypeStruct((B, N), jnp.float32),
        grid=(N // tile_n,),
        in_specs=[pl.BlockSpec((B, K), lambda j: (0, 0)),
                  pl.BlockSpec((K, tile_n), lambda j: (0, j))],
        out_specs=pl.BlockSpec((B, tile_n), lambda j: (0, j)),
        compiler_params=pltpu.CompilerParams(
            dimension_semantics=("parallel",)),
    )(x_aug, w_aug)


# ------------------- roll sign-convention calibration ------------------------
def _probe_roll_sign():
    """+1 if pltpu.roll follows jnp.roll semantics, -1 for the opposite rotation."""
    def k(x_ref, o_ref):
        o_ref[...] = pltpu.roll(x_ref[...], 1, axis=1)
    x = jnp.tile(jnp.arange(128, dtype=jnp.float32), (8, 1))
    out = np.asarray(jax.block_until_ready(
        pl.pallas_call(k, out_shape=jax.ShapeDtypeStruct((8, 128), jnp.float32))(x)))
    v = int(round(float(out[0, 0])))
    if v == 127:        # jnp.roll-like: out[i] = x[(i - shift) % n]
        return 1
    if v == 1:          # opposite:      out[i] = x[(i + shift) % n]
        return -1
    raise RuntimeError(f"unexpected pltpu.roll semantics (probe value {v})")


# --------------------- fused ConvT(128->64)+ReLU, ConvT(64->3)+tanh ----------
def _fused_convt_kernel(x_ref, w2t_ref, b2_ref, w1t_ref, b1_ref, o_ref,
                        t2_ref, y2_ref, p_ref, *, roll_sign):
    c = CAPACITY

    # ---- hoisted border masks for every (dr, dc) in {-1,0,1}^2 \ {(0,0)} ----
    lane = jax.lax.broadcasted_iota(jnp.int32, (1, SP), 1)
    row_id = lane // 32
    col_id = lane % 32
    masks = {}
    for dr in (-1, 0, 1):
        for dc in (-1, 0, 1):
            if dr == 0 and dc == 0:
                continue
            ok = None
            if dr != 0:
                ok = (row_id + dr >= 0) & (row_id + dr < 32)
            if dc != 0:
                okc = (col_id + dc >= 0) & (col_id + dc < 32)
                ok = okc if ok is None else ok & okc
            masks[(dr, dc)] = ok

    def shift2d(v, dr, dc):
        # out[:, i*32+j] = v[:, (i+dr)*32 + (j+dc)]   (0 outside the 32x32 plane)
        s = dr * 32 + dc
        if s == 0:
            return v
        shifted = pltpu.roll(v, (-s * roll_sign) % SP, axis=1)
        return jnp.where(masks[(dr, dc)], shifted, 0.0)

    # ---- conv2: ConvTranspose2d(128 -> 64) + ReLU, 4 parities kept in VMEM ----
    CH = 16                                   # Cout chunk for the shift/accumulate pass
    for p2 in range(4):
        ph, pw = divmod(p2, 2)
        taps = _parity_taps(ph, pw)
        # one full-M MXU dot for all 4 taps of this parity: (256,128)@(128,1024)
        t2_ref[...] = jnp.dot(w2t_ref[p2], x_ref[0],
                              preferred_element_type=jnp.float32)
        for c0 in range(0, c, CH):
            acc = None
            for t, (_kk, (dr, dc)) in enumerate(taps):
                v = shift2d(t2_ref[t * c + c0: t * c + c0 + CH, :], dr, dc)
                acc = v if acc is None else acc + v
            acc = acc + b2_ref[c0:c0 + CH, :]
            y2_ref[c0:c0 + CH, p2 * SP:(p2 + 1) * SP] = jnp.maximum(acc, 0.0)

    # ---- conv1 tap products in ONE dot: (128,64)@(64,4096) ----
    # w1t rows are zero-padded to 8 per tap so all later slices are sublane-aligned.
    p_ref[...] = jnp.dot(w1t_ref[...], y2_ref[...],
                         preferred_element_type=jnp.float32)

    # ---- conv1: gather 4 taps per stride-4 output phase, add bias, tanh, store ----
    b1b = jnp.broadcast_to(b1_ref[...], (8, SP))          # hoisted bias broadcast
    for pr in range(4):
        qr, PH = divmod(pr, 2)
        for pc in range(4):
            qc, PW = divmod(pc, 2)
            acc = b1b
            for (KH, dR) in ROWTAPS[PH]:
                ph2, sr = (qr + dR) % 2, (qr + dR) // 2
                for (KW, dC) in ROWTAPS[PW]:
                    pw2, sc = (qc + dC) % 2, (qc + dC) // 2
                    t1 = KH * 4 + KW
                    p2 = 2 * ph2 + pw2
                    sl = p_ref[8 * t1: 8 * t1 + 8, p2 * SP:(p2 + 1) * SP]   # (8,1024) aligned
                    acc = acc + shift2d(sl, sr, sc)
            sub = pr * 4 + pc
            # rows 3..7 of acc are zero-weight padding; drop them before tanh/store.
            o_ref[0, :, sub * SP:(sub + 1) * SP] = jnp.tanh(acc[0:3, :])


def fused_convt_pallas(h_cm, w2t, b2c, w1tp, b1p, *, roll_sign):
    """h_cm: (B, 128, 1024) channel-major.  Returns (B, 3, 16*1024):
    lanes = (row_phase*4 + col_phase)*1024 + flattened 32x32 sub-image."""
    B = h_cm.shape[0]
    c = CAPACITY
    kernel = functools.partial(_fused_convt_kernel, roll_sign=roll_sign)
    return pl.pallas_call(
        kernel,
        out_shape=jax.ShapeDtypeStruct((B, 3, 16 * SP), jnp.float32),
        grid=(B,),
        in_specs=[pl.BlockSpec((1, 2 * c, SP), lambda b: (b, 0, 0)),
                  pl.BlockSpec((4, 4 * c, 2 * c), lambda b: (0, 0, 0)),
                  pl.BlockSpec((c, 1), lambda b: (0, 0)),
                  pl.BlockSpec((2 * c, c), lambda b: (0, 0)),
                  pl.BlockSpec((8, 1), lambda b: (0, 0))],
        out_specs=pl.BlockSpec((1, 3, 16 * SP), lambda b: (b, 0, 0)),
        scratch_shapes=[pltpu.VMEM((4 * c, SP), jnp.float32),       # conv2 raw tap products
                        pltpu.VMEM((c, 4 * SP), jnp.float32),       # ReLU intermediate y2
                        pltpu.VMEM((2 * c, 4 * SP), jnp.float32)],  # conv1 tap products
        compiler_params=pltpu.CompilerParams(
            dimension_semantics=("parallel",)),
    )(h_cm, w2t, b2c, w1tp, b1p)


# --------------------------- parameter preparation ---------------------------
def prepare_params(params):
    """One-time host-side reshuffle of the PyTorch-layout weights for the kernels."""
    c = CAPACITY
    # FC: fold bias as the last row of an augmented weight matrix.
    wfc_aug = jnp.concatenate([params["wfc"], params["bfc"][None, :]], axis=0)   # (11, N)

    w2 = params["w2"]                                  # (2c, c, 4, 4) = (Cin, Cout, kh, kw)
    w1 = params["w1"]                                  # (c, 3, 4, 4)
    w2_k = jnp.transpose(w2, (2, 3, 1, 0))             # (4, 4, Cout, Cin)
    blocks = []
    for ph in range(2):
        for pw in range(2):
            taps = [w2_k[kh, kw] for ((kh, kw), _s) in _parity_taps(ph, pw)]
            blocks.append(jnp.concatenate(taps, axis=0))          # (4c, 2c) = (256, 128)
    w2t = jnp.stack(blocks, axis=0)                               # (4, 256, 128)

    # conv1 weights: 16 taps, each zero-padded from 3 to 8 rows for sublane alignment.
    w1_k = jnp.transpose(w1, (2, 3, 1, 0)).reshape(16, 3, c)      # [(kh*4+kw), co, ci]
    w1tp = jnp.zeros((16, 8, c), jnp.float32).at[:, :3, :].set(w1_k).reshape(16 * 8, c)
    b1p = jnp.zeros((8, 1), jnp.float32).at[:3, 0].set(params["b1"])

    return {"wfc_aug": wfc_aug,
            "w2t": w2t, "b2": params["b2"].reshape(c, 1),
            "w1t": w1tp, "b1": b1p}


# -------------------------------- Decoder ------------------------------------
def decoder_forward(x, prep, *, roll_sign=1):
    """x: (B, latent_dims).  Returns (B, 3, 128, 128) matching torch NCHW."""
    B = x.shape[0]
    x_aug = jnp.concatenate([x, jnp.ones((B, 1), x.dtype)], axis=1)
    h = fc_pallas(x_aug, prep["wfc_aug"])                         # (B, 2c*32*32)
    h = h.reshape(B, 2 * CAPACITY, SP)                            # channel-major view (free)
    y = fused_convt_pallas(h, prep["w2t"], prep["b2"],
                           prep["w1t"], prep["b1"], roll_sign=roll_sign)   # (B, 3, 16*SP)
    # de-interleave the 16 stride-4 output phases -> (B, 3, 128, 128)
    y = y.reshape(B, 3, 4, 4, 32, 32).transpose(0, 1, 4, 2, 5, 3)
    return y.reshape(B, 3, 128, 128)


# --------------------------- pure-JAX reference -------------------------------
def _convt_ref(x_nchw, w_torch, bias):
    w_conv = jnp.flip(w_torch, (2, 3)).transpose(1, 0, 2, 3)      # (Cout, Cin, 4, 4)
    y = jax.lax.conv_general_dilated(
        x_nchw, w_conv, window_strides=(1, 1), padding=((2, 2), (2, 2)),
        lhs_dilation=(2, 2), dimension_numbers=("NCHW", "OIHW", "NCHW"))
    return y + bias[None, :, None, None]


def decoder_ref(x, params):
    B = x.shape[0]
    c = CAPACITY
    h = x @ params["wfc"] + params["bfc"]
    h = h.reshape(B, 2 * c, 32, 32)
    h = jax.nn.relu(_convt_ref(h, params["w2"], params["b2"]))
    return jnp.tanh(_convt_ref(h, params["w1"], params["b1"]))


# ---------------------------------- main --------------------------------------
if __name__ == "__main__":
    B = 2
    c = CAPACITY
    key = jax.random.PRNGKey(0)
    ks = jax.random.split(key, 7)

    # Deterministic synthetic parameters (shapes match the nn.Module __init__).
    params = {
        # nn.Linear(10, 2c*32*32): stored as (in, out).
        "wfc": jax.random.normal(ks[0], (LATENT_DIMS, 2 * c * 32 * 32), jnp.float32) * 0.05,
        "bfc": jax.random.normal(ks[1], (2 * c * 32 * 32,), jnp.float32) * 0.05,
        # ConvTranspose2d weights in PyTorch layout (Cin, Cout, kH, kW).
        "w2": jax.random.normal(ks[2], (2 * c, c, 4, 4), jnp.float32) * 0.02,
        "b2": jax.random.normal(ks[3], (c,), jnp.float32) * 0.02,
        "w1": jax.random.normal(ks[4], (c, 3, 4, 4), jnp.float32) * 0.02,
        "b1": jax.random.normal(ks[5], (3,), jnp.float32) * 0.02,
    }
    x = jax.random.normal(ks[6], (B, LATENT_DIMS), jnp.float32)

    roll_sign = _probe_roll_sign()
    prep = prepare_params(params)

    fwd = jax.jit(functools.partial(decoder_forward, roll_sign=roll_sign))
    out = jax.block_until_ready(fwd(x, prep))
    assert out.shape == (B, 3, 128, 128), out.shape

    ref = jax.block_until_ready(decoder_ref(x, params))
    if not np.allclose(np.asarray(out), np.asarray(ref), atol=2e-3, rtol=2e-3):
        err = float(jnp.max(jnp.abs(out - ref)))
        raise AssertionError(f"Pallas decoder mismatch vs reference, max abs err={err}")

    print("KERNEL_OK")
</pallas_src>

<mosaic_0001>
module attributes {stable_mosaic.version = 11 : i64} {
  func.func @k(%arg0: memref<8x128xf32, #tpu.memory_space<vmem>>, %arg1: memref<8x128xf32, #tpu.memory_space<vmem>>) attributes {dimension_semantics = [], scalar_prefetch = 0 : i64, scratch_operands = 0 : i64, tpu.core_type = #tpu.core_type<tc>} {
    %c0 = arith.constant 0 : index
    %c0_0 = arith.constant 0 : index
    %0 = vector.load %arg0[%c0, %c0_0] : memref<8x128xf32, #tpu.memory_space<vmem>>, vector<8x128xf32>
    %c1_i32 = arith.constant 1 : i32
    %1 = tpu.dynamic_rotate %0 by %c1_i32 dim 1 : vector<8x128xf32>, i32 -> vector<8x128xf32>
    %c0_1 = arith.constant 0 : index
    %c0_2 = arith.constant 0 : index
    %2 = vector.load %arg1[%c0_1, %c0_2] : memref<8x128xf32, #tpu.memory_space<vmem>>, vector<8x128xf32>
    tpu.vector_store %arg1[%c0_1, %c0_2], %1 {strides = array<i32>} : memref<8x128xf32, #tpu.memory_space<vmem>>, vector<8x128xf32>,
    return
  }
}

</mosaic_0001>

<llo_original>
// kernel: tpu_custom_call.1
$region0: #{tpu_custom_call.1}
  #allocation0 [shape = 'u32[]', space=smem, size = 0x4, offset = 0x4, fixed_abs, tag = 'smem constant byte address 0x4 - core index']
  #allocation1 [shape = 'u32[144,128]{1,0:T(1,128)}', space=vmem, size = 0x12000, scoped, tag = 'internal scratch']
  %s0 = inlined_call_operand.hbm [shape: f32[8,128], index: 0, kind: input, shape index: {}]
  %s1 = inlined_call_operand.hbm [shape: f32[8,128], index: 1, kind: output, shape index: {}]
  %s2 = sld [smem:[#allocation0]]
  $region18: #{tpu_custom_call.1} parent=0
    _
  %s4 = ssub.s32 1, %s2
  %s5 = scalar_select 0, %s4, %s2
  $region1: #{tpu_custom_call.1} parent=0
    #allocation2 [shape = 'u8[4096]{0}', space=vmem, size = 0x1000, scoped, tag = 'input window, operand 0, single buffered']
    #allocation3 [shape = 's32[1]{0}', space=sflag, size = 0x4, scoped, tag = 'scoped memory for tpu_custom_call.1']
    #allocation4 [shape = 's32[1]{0}', space=sflag, size = 0x4, scoped, tag = 'scoped memory for tpu_custom_call.1']
    #allocation5 [shape = 'u8[4096]{0}', space=vmem, size = 0x1000, scoped, tag = 'output window, operand 0, single buffered']
    %6 = vsyncpa [#allocation3], 0
    %7 = vsyncpa [#allocation4], 0
    // Predicated region
    $region2: #{tpu_custom_call.1} parent=1 // pred_check
      _
    $region3: #{tpu_custom_call.1} parent=1 // pred_check_branch
      %9 = sbr.rel (0) target = $region5
    $region4: #{tpu_custom_call.1} parent=1 // pred_region
      %s11 = ssub.s32 128, 128
      %12 = vsyncadd [#allocation3], %s11
      %s14 = sshll.u32 [#allocation2], 4
      %s15 = int_to_ptr.vmem [resolvable:$true] %s14
      %17 = dma.hbm_to_vmem [thread:$0]  %s0, 128, %s15, [#allocation3]
    $region5: #{tpu_custom_call.1} parent=1 // pred_fallthru
      _
    // Predicated region
    $region6: #{tpu_custom_call.1} parent=1 // pred_check
      _
    $region7: #{tpu_custom_call.1} parent=1 // pred_check_branch
      %19 = sbr.rel (0) target = $region9
    $region8: #{tpu_custom_call.1} parent=1 // pred_region
      %20 = dma.done [#allocation3], 128
    $region9: #{tpu_custom_call.1} parent=1 // pred_fallthru
      _
    %v21 = vld [vmem:[#allocation2] sm:$0xff]
    %22 = vrot.lane.b32.xlu0 %v21, 1
    %v23 = vpop.permute.xlu0 %22
    %24 = vst [vmem:[#allocation5] sm:$0xff] %v23
    // Predicated region
    $region10: #{tpu_custom_call.1} parent=1 // pred_check
      _
    $region11: #{tpu_custom_call.1} parent=1 // pred_check_branch
      %26 = sbr.rel (0) target = $region13
    $region12: #{tpu_custom_call.1} parent=1 // pred_region
      %s28 = ssub.s32 128, 128
      %29 = vsyncadd [#allocation4], %s28
      %s31 = sshll.u32 [#allocation5], 4
      %s32 = int_to_ptr.vmem [resolvable:$true] %s31
      %34 = dma.vmem_to_hbm [thread:$0]  %s32, 128, %s1, [#allocation4]
    $region13: #{tpu_custom_call.1} parent=1 // pred_fallthru
      _
    // Predicated region
    $region14: #{tpu_custom_call.1} parent=1 // pred_check
      _
    $region15: #{tpu_custom_call.1} parent=1 // pred_check_branch
      %36 = sbr.rel (0) target = $region17
    $region16: #{tpu_custom_call.1} parent=1 // pred_region
      %37 = dma.done [#allocation4], 128
    $region17: #{tpu_custom_call.1} parent=1 // pred_fallthru
      _
    %38 = vsyncpa [#allocation3], 1
    %39 = vsyncpa [#allocation4], 1

</llo_original>
